<compile_context>
chip_gen: v6e
topology: v6e:2x2x1
jax: 0.10.0
libtpu: 0.0.40
codegen_flags: <defaults>
</compile_context>

<pallas_src>
import jax
import jax.numpy as jnp
from jax.experimental import pallas as pl
from jax.experimental.pallas import tpu as pltpu


def mlp_kernel(x_ref, w1_ref, b1_ref, w2_ref, b2_ref, w3_ref, b3_ref, out_ref):
    # x tile: (TB, input_size) f32 in HBM -> bf16 MXU operand (cast in-kernel).
    x = x_ref[...].astype(jnp.bfloat16)

    # fc1 + ReLU   (dropout = identity in eval mode); f32 accumulate + bias.
    h1 = jnp.dot(x, w1_ref[...], preferred_element_type=jnp.float32) + b1_ref[...]
    h1 = jnp.maximum(h1, 0.0).astype(jnp.bfloat16)

    # fc2 + ReLU   (dropout = identity in eval mode)
    h2 = jnp.dot(h1, w2_ref[...], preferred_element_type=jnp.float32) + b2_ref[...]
    h2 = jnp.maximum(h2, 0.0).astype(jnp.bfloat16)

    # fc3 (logits, no activation); epilogue cast to bf16 output (halves writeback).
    out = jnp.dot(h2, w3_ref[...], preferred_element_type=jnp.float32) + b3_ref[...]
    out_ref[...] = out.astype(out_ref.dtype)


def _round_up(x, m):
    return ((x + m - 1) // m) * m


def _cdiv(a, b):
    return -(-a // b)


def prepare_params(params):
    """One-time (model-load) prep: bf16 MXU weights, f32 biases, lane-dense pad
    of the class dim to a multiple of 128. Call once, reuse every forward."""
    num_classes = params["w3"].shape[1]
    nc_pad = _round_up(num_classes, 128)
    w3 = params["w3"].astype(jnp.bfloat16)
    b3 = params["b3"].astype(jnp.float32)
    if nc_pad != num_classes:
        w3 = jnp.pad(w3, ((0, 0), (0, nc_pad - num_classes)))
        b3 = jnp.pad(b3, ((0, 0), (0, nc_pad - num_classes)))
    return {
        "w1": params["w1"].astype(jnp.bfloat16),
        "b1": params["b1"].astype(jnp.float32),
        "w2": params["w2"].astype(jnp.bfloat16),
        "b2": params["b2"].astype(jnp.float32),
        "w3": w3,
        "b3": b3,
        "num_classes": num_classes,
        "nc_pad": nc_pad,
    }


def attribute_classifier_forward(x, prepared, *, block_batch=1024):
    """x: (batch, input_size) f32; prepared: output of prepare_params().

    Returns padded bf16 logits of shape (b_pad, nc_pad).
    logits[:batch, :num_classes] equals the PyTorch module's eval-mode output
    (up to bf16 rounding). Pad columns are exactly zero; no slice is performed
    here to avoid an extra full HBM pass over the logits.
    """
    batch, input_size = x.shape
    w1, b1 = prepared["w1"], prepared["b1"]
    w2, b2 = prepared["w2"], prepared["b2"]
    w3, b3 = prepared["w3"], prepared["b3"]
    nc_pad = prepared["nc_pad"]
    hidden1 = w1.shape[1]
    hidden2 = w2.shape[1]

    # --- batch tiling: even split (minimal tail pad), >=2 steps when possible
    # (so v7x's 2 TensorCores both get work via "parallel" semantics).
    steps = max(1, _cdiv(batch, block_batch))
    if batch >= 16:
        steps = max(steps, 2)
    tb = _round_up(_cdiv(batch, steps), 8)
    b_pad = _round_up(batch, tb)

    x_p = x.astype(jnp.float32)
    if b_pad != batch:
        x_p = jnp.pad(x_p, ((0, b_pad - batch), (0, 0)))

    grid = (b_pad // tb,)

    # --- cost estimate (advisory)
    flops = 2 * b_pad * (input_size * hidden1 + hidden1 * hidden2 + hidden2 * nc_pad)
    bytes_accessed = (
        b_pad * input_size * 4                         # x (f32) in
        + (w1.size + w2.size + w3.size) * 2            # bf16 weights (resident)
        + (b1.size + b2.size + b3.size) * 4            # f32 biases
        + b_pad * nc_pad * 2                           # bf16 logits out
    )

    # --- VMEM budget computed from the real footprint (not "all of VMEM").
    def _vmem_bytes(shape, dtype_bytes, sublane=8):
        r = _round_up(shape[0], sublane)
        c = _round_up(shape[1], 128)
        return r * c * dtype_bytes

    resident_bytes = (
        _vmem_bytes(w1.shape, 2, 16) + _vmem_bytes(w2.shape, 2, 16)
        + _vmem_bytes(w3.shape, 2, 16)
        + _vmem_bytes(b1.shape, 4) + _vmem_bytes(b2.shape, 4) + _vmem_bytes(b3.shape, 4)
    )
    streamed_bytes = 2 * (_vmem_bytes((tb, input_size), 4) + _vmem_bytes((tb, nc_pad), 2))
    scratch_bytes = 2 * tb * 128 * 4  # h1/h2 f32 intermediates
    vmem_limit = int(
        min(max(2 * (resident_bytes + streamed_bytes + scratch_bytes),
                8 * 1024 * 1024),
            32 * 1024 * 1024)
    )

    def resident(shape):
        # Full-size block, same block every grid step -> stays in VMEM.
        return pl.BlockSpec(shape, lambda i: (0, 0))

    out_padded = pl.pallas_call(
        mlp_kernel,
        out_shape=jax.ShapeDtypeStruct((b_pad, nc_pad), jnp.bfloat16),
        grid_spec=pltpu.PrefetchScalarGridSpec(
            num_scalar_prefetch=0,
            grid=grid,
            in_specs=[
                pl.BlockSpec((tb, input_size), lambda i: (i, 0)),  # x: batch-tiled
                resident(w1.shape),
                resident(b1.shape),
                resident(w2.shape),
                resident(b2.shape),
                resident(w3.shape),
                resident(b3.shape),
            ],
            out_specs=pl.BlockSpec((tb, nc_pad), lambda i: (i, 0)),
        ),
        compiler_params=pltpu.CompilerParams(
            dimension_semantics=("parallel",),   # shard batch tiles across TCs (v7x)
            vmem_limit_bytes=vmem_limit,
        ),
        cost_estimate=pl.CostEstimate(
            flops=flops, bytes_accessed=bytes_accessed, transcendentals=0
        ),
    )(x_p, w1, b1, w2, b2, w3, b3)

    return out_padded


def init_params(key, input_size, num_classes):
    """Deterministic PyTorch-style (Kaiming-uniform-ish) init for the 3 Linear layers.
    Weights stored (in_features, out_features), biases (1, out_features):
    y = x @ W + b (numerically identical to PyTorch nn.Linear)."""
    def linear(k, fan_in, fan_out):
        kw, kb = jax.random.split(k)
        bound = 1.0 / jnp.sqrt(float(fan_in))
        w = jax.random.uniform(kw, (fan_in, fan_out), jnp.float32, -bound, bound)
        b = jax.random.uniform(kb, (1, fan_out), jnp.float32, -bound, bound)
        return w, b

    k1, k2, k3 = jax.random.split(key, 3)
    w1, b1 = linear(k1, input_size, 128)
    w2, b2 = linear(k2, 128, 128)
    w3, b3 = linear(k3, 128, num_classes)
    return {"w1": w1, "b1": b1, "w2": w2, "b2": b2, "w3": w3, "b3": b3}


if __name__ == "__main__":
    key = jax.random.PRNGKey(0)
    k_x, k_p = jax.random.split(key)

    batch = 8
    input_size = 32      # stand-in for X_train.shape[1]
    num_classes = 200

    x = jax.random.normal(k_x, (batch, input_size), dtype=jnp.float32)
    raw_params = init_params(k_p, input_size, num_classes)
    prepared = prepare_params(raw_params)   # one-time bf16 cast + class-dim pad

    logits_padded = attribute_classifier_forward(x, prepared)
    jax.block_until_ready(logits_padded)

    # Correctness check (outside the hot path): slice the padded slab back to
    # (batch, num_classes) and compare to a plain-JAX f32 reference. Kernel uses
    # bf16 MXU operands / bf16 logits with f32 accumulation -> loose tolerance.
    logits = logits_padded[:batch, :num_classes].astype(jnp.float32)
    ref = jnp.maximum(x @ raw_params["w1"] + raw_params["b1"], 0.0)
    ref = jnp.maximum(ref @ raw_params["w2"] + raw_params["b2"], 0.0)
    ref = ref @ raw_params["w3"] + raw_params["b3"]

    assert logits_padded.shape[1] % 128 == 0
    assert logits.shape == (batch, num_classes)
    assert jnp.allclose(logits, ref, atol=1e-1, rtol=1e-1), "mismatch vs reference"
    # pad columns must be exactly zero (zero-padded w3/b3)
    assert jnp.all(logits_padded[:batch, num_classes:] == 0)

    print("KERNEL_OK")
</pallas_src>

<mosaic_0001>
module attributes {stable_mosaic.version = 11 : i64} {
  func.func @mlp_kernel(%arg0: i32, %arg1: memref<8x32xf32, #tpu.memory_space<vmem>>, %arg2: memref<32x128xbf16, #tpu.memory_space<vmem>>, %arg3: memref<1x128xf32, #tpu.memory_space<vmem>>, %arg4: memref<128x128xbf16, #tpu.memory_space<vmem>>, %arg5: memref<1x128xf32, #tpu.memory_space<vmem>>, %arg6: memref<128x256xbf16, #tpu.memory_space<vmem>>, %arg7: memref<1x256xf32, #tpu.memory_space<vmem>>, %arg8: memref<8x256xbf16, #tpu.memory_space<vmem>>) attributes {dimension_semantics = [#tpu.dimension_semantics<parallel>], iteration_bounds = array<i64: 1>, scalar_prefetch = 0 : i64, scratch_operands = 0 : i64, tpu.core_type = #tpu.core_type<tc>, window_params = [{transform_indices = @transform_0, window_bounds = array<i64: 8, 32>}, {pipeline_mode = #tpu.pipeline_mode<synchronous>, transform_indices = @transform_1, window_bounds = array<i64: 32, 128>}, {pipeline_mode = #tpu.pipeline_mode<synchronous>, transform_indices = @transform_2, window_bounds = array<i64: 1, 128>}, {pipeline_mode = #tpu.pipeline_mode<synchronous>, transform_indices = @transform_3, window_bounds = array<i64: 128, 128>}, {pipeline_mode = #tpu.pipeline_mode<synchronous>, transform_indices = @transform_4, window_bounds = array<i64: 1, 128>}, {pipeline_mode = #tpu.pipeline_mode<synchronous>, transform_indices = @transform_5, window_bounds = array<i64: 128, 256>}, {pipeline_mode = #tpu.pipeline_mode<synchronous>, transform_indices = @transform_6, window_bounds = array<i64: 1, 256>}, {transform_indices = @transform_7, window_bounds = array<i64: 8, 256>}]} {
    %c0 = arith.constant 0 : index
    %c0_0 = arith.constant 0 : index
    %0 = vector.load %arg1[%c0, %c0_0] : memref<8x32xf32, #tpu.memory_space<vmem>>, vector<8x32xf32>
    %1 = arith.truncf %0 : vector<8x32xf32> to vector<8x32xbf16>
    %c0_1 = arith.constant 0 : index
    %c0_2 = arith.constant 0 : index
    %2 = vector.load %arg2[%c0_1, %c0_2] : memref<32x128xbf16, #tpu.memory_space<vmem>>, vector<32x128xbf16>
    %cst = arith.constant dense<0.000000e+00> : vector<8x128xf32>
    %3 = tpu.matmul %1, %2, %cst {dimension_numbers = #tpu.dot_dimension_numbers<[1], [0], [0], [1], [0, 0, 1, 1], [], []>} : vector<8x32xbf16>, vector<32x128xbf16>, vector<8x128xf32> -> vector<8x128xf32>
    %c0_3 = arith.constant 0 : index
    %c0_4 = arith.constant 0 : index
    %4 = vector.load %arg3[%c0_3, %c0_4] : memref<1x128xf32, #tpu.memory_space<vmem>>, vector<1x128xf32>
    %5 = vector.broadcast %4 : vector<1x128xf32> to vector<8x128xf32>
    %6 = arith.addf %3, %5 : vector<8x128xf32>
    %cst_5 = arith.constant 0.000000e+00 : f32
    %7 = vector.broadcast %cst_5 : f32 to vector<8x128xf32>
    %8 = arith.maximumf %6, %7 : vector<8x128xf32>
    %9 = arith.truncf %8 : vector<8x128xf32> to vector<8x128xbf16>
    %c0_6 = arith.constant 0 : index
    %c0_7 = arith.constant 0 : index
    %10 = vector.load %arg4[%c0_6, %c0_7] : memref<128x128xbf16, #tpu.memory_space<vmem>>, vector<128x128xbf16>
    %cst_8 = arith.constant dense<0.000000e+00> : vector<8x128xf32>
    %11 = tpu.matmul %9, %10, %cst_8 {dimension_numbers = #tpu.dot_dimension_numbers<[1], [0], [0], [1], [0, 0, 1, 1], [], []>} : vector<8x128xbf16>, vector<128x128xbf16>, vector<8x128xf32> -> vector<8x128xf32>
    %c0_9 = arith.constant 0 : index
    %c0_10 = arith.constant 0 : index
    %12 = vector.load %arg5[%c0_9, %c0_10] : memref<1x128xf32, #tpu.memory_space<vmem>>, vector<1x128xf32>
    %13 = vector.broadcast %12 : vector<1x128xf32> to vector<8x128xf32>
    %14 = arith.addf %11, %13 : vector<8x128xf32>
    %cst_11 = arith.constant 0.000000e+00 : f32
    %15 = vector.broadcast %cst_11 : f32 to vector<8x128xf32>
    %16 = arith.maximumf %14, %15 : vector<8x128xf32>
    %17 = arith.truncf %16 : vector<8x128xf32> to vector<8x128xbf16>
    %c0_12 = arith.constant 0 : index
    %c0_13 = arith.constant 0 : index
    %18 = vector.load %arg6[%c0_12, %c0_13] : memref<128x256xbf16, #tpu.memory_space<vmem>>, vector<128x256xbf16>
    %cst_14 = arith.constant dense<0.000000e+00> : vector<8x256xf32>
    %19 = tpu.matmul %17, %18, %cst_14 {dimension_numbers = #tpu.dot_dimension_numbers<[1], [0], [0], [1], [0, 0, 1, 1], [], []>} : vector<8x128xbf16>, vector<128x256xbf16>, vector<8x256xf32> -> vector<8x256xf32>
    %c0_15 = arith.constant 0 : index
    %c0_16 = arith.constant 0 : index
    %20 = vector.load %arg7[%c0_15, %c0_16] : memref<1x256xf32, #tpu.memory_space<vmem>>, vector<1x256xf32>
    %21 = vector.broadcast %20 : vector<1x256xf32> to vector<8x256xf32>
    %22 = arith.addf %19, %21 : vector<8x256xf32>
    %23 = arith.truncf %22 : vector<8x256xf32> to vector<8x256xbf16>
    %c0_17 = arith.constant 0 : index
    %c0_18 = arith.constant 0 : index
    %24 = vector.load %arg8[%c0_17, %c0_18] : memref<8x256xbf16, #tpu.memory_space<vmem>>, vector<8x256xbf16>
    tpu.vector_store %arg8[%c0_17, %c0_18], %23 {strides = array<i32>} : memref<8x256xbf16, #tpu.memory_space<vmem>>, vector<8x256xbf16>,
    return
  }
  func.func @transform_0(%arg0: i32) -> (i32, i32) {
    %c0_i32 = arith.constant 0 : i32
    %c0_i32_0 = arith.constant 0 : i32
    return %arg0, %c0_i32 : i32, i32
  }
  func.func @transform_1(%arg0: i32) -> (i32, i32) {
    %c0_i32 = arith.constant 0 : i32
    %c0_i32_0 = arith.constant 0 : i32
    %c0_i32_1 = arith.constant 0 : i32
    return %c0_i32, %c0_i32_0 : i32, i32
  }
  func.func @transform_2(%arg0: i32) -> (i32, i32) {
    %c0_i32 = arith.constant 0 : i32
    %c0_i32_0 = arith.constant 0 : i32
    %c0_i32_1 = arith.constant 0 : i32
    return %c0_i32, %c0_i32_0 : i32, i32
  }
  func.func @transform_3(%arg0: i32) -> (i32, i32) {
    %c0_i32 = arith.constant 0 : i32
    %c0_i32_0 = arith.constant 0 : i32
    %c0_i32_1 = arith.constant 0 : i32
    return %c0_i32, %c0_i32_0 : i32, i32
  }
  func.func @transform_4(%arg0: i32) -> (i32, i32) {
    %c0_i32 = arith.constant 0 : i32
    %c0_i32_0 = arith.constant 0 : i32
    %c0_i32_1 = arith.constant 0 : i32
    return %c0_i32, %c0_i32_0 : i32, i32
  }
  func.func @transform_5(%arg0: i32) -> (i32, i32) {
    %c0_i32 = arith.constant 0 : i32
    %c0_i32_0 = arith.constant 0 : i32
    %c0_i32_1 = arith.constant 0 : i32
    return %c0_i32, %c0_i32_0 : i32, i32
  }
  func.func @transform_6(%arg0: i32) -> (i32, i32) {
    %c0_i32 = arith.constant 0 : i32
    %c0_i32_0 = arith.constant 0 : i32
    %c0_i32_1 = arith.constant 0 : i32
    return %c0_i32, %c0_i32_0 : i32, i32
  }
  func.func @transform_7(%arg0: i32) -> (i32, i32) {
    %c0_i32 = arith.constant 0 : i32
    %c0_i32_0 = arith.constant 0 : i32
    return %arg0, %c0_i32 : i32, i32
  }
}

</mosaic_0001>

<llo_original>
// kernel: tpu_custom_call.1
$region0: #{tpu_custom_call.1}
  #allocation0 [shape = 'u32[]', space=smem, size = 0x4, offset = 0x4, fixed_abs, tag = 'smem constant byte address 0x4 - core index']
  #allocation1 [shape = 'u32[144,128]{1,0:T(1,128)}', space=vmem, size = 0x12000, scoped, tag = 'internal scratch']
  %s0 = inlined_call_operand.hbm [shape: f32[8,32], index: 0, kind: input, shape index: {}]
  %s1 = inlined_call_operand.hbm [shape: bf16[32,128], index: 1, kind: input, shape index: {}]
  %s2 = inlined_call_operand.vmem [shape: f32[1,128], index: 2, kind: input, shape index: {}]
  %s3 = inlined_call_operand.hbm [shape: bf16[128,128], index: 3, kind: input, shape index: {}]
  %s4 = inlined_call_operand.vmem [shape: f32[1,128], index: 4, kind: input, shape index: {}]
  %s5 = inlined_call_operand.hbm [shape: bf16[128,256], index: 5, kind: input, shape index: {}]
  %s6 = inlined_call_operand.vmem [shape: f32[1,256], index: 6, kind: input, shape index: {}]
  %s7 = inlined_call_operand.hbm [shape: bf16[8,256], index: 7, kind: output, shape index: {}]
  %s8 = sld [smem:[#allocation0]]
  $region54: #{tpu_custom_call.1} parent=0
    _
  %s10 = ssub.s32 1, %s8
  %s11 = scalar_select 0, %s10, %s8
  $region1: #{tpu_custom_call.1} parent=0
    #allocation2 [shape = 'u8[4096]{0}', space=vmem, size = 0x1000, scoped, tag = 'input window, operand 0, single buffered']
    #allocation3 [shape = 's32[1]{0}', space=sflag, size = 0x4, scoped, tag = 'scoped memory for tpu_custom_call.1']
    #allocation4 [shape = 's32[1]{0}', space=sflag, size = 0x4, scoped, tag = 'scoped memory for tpu_custom_call.1']
    #allocation5 [shape = 'u8[8192]{0}', space=vmem, size = 0x2000, scoped, tag = 'input window, operand 1, single buffered']
    #allocation6 [shape = 's32[1]{0}', space=sflag, size = 0x4, scoped, tag = 'scoped memory for tpu_custom_call.1']
    #allocation7 [shape = 'u8[32768]{0}', space=vmem, size = 0x8000, scoped, tag = 'input window, operand 3, single buffered']
    #allocation8 [shape = 'u8[65536]{0}', space=vmem, size = 0x10000, scoped, tag = 'input window, operand 5, single buffered']
    #allocation9 [shape = 's32[1]{0}', space=sflag, size = 0x4, scoped, tag = 'scoped memory for tpu_custom_call.1']
    #allocation10 [shape = 'u8[4096]{0}', space=vmem, size = 0x1000, scoped, tag = 'output window, operand 0, single buffered']
    %12 = vsyncpa [#allocation3], 0
    %13 = vsyncpa [#allocation6], 0
    %14 = vsyncpa [#allocation9], 0
    %15 = vsyncpa [#allocation4], 0
    // Predicated region
    $region2: #{tpu_custom_call.1} parent=1 // pred_check
      _
    $region3: #{tpu_custom_call.1} parent=1 // pred_check_branch
      %17 = sbr.rel (0) target = $region5
    $region4: #{tpu_custom_call.1} parent=1 // pred_region
      %s19 = ssub.s32 128, 128
      %20 = vsyncadd [#allocation3], %s19
      %s22 = sshll.u32 [#allocation2], 4
      %s23 = int_to_ptr.vmem [resolvable:$true] %s22
      %25 = dma.hbm_to_vmem [thread:$0]  %s0, 128, %s23, [#allocation3]
    $region5: #{tpu_custom_call.1} parent=1 // pred_fallthru
      _
    // Predicated region
    $region6: #{tpu_custom_call.1} parent=1 // pred_check
      _
    $region7: #{tpu_custom_call.1} parent=1 // pred_check_branch
      %27 = sbr.rel (0) target = $region9
    $region8: #{tpu_custom_call.1} parent=1 // pred_region
      %s29 = ssub.s32 256, 256
      %30 = vsyncadd [#allocation6], %s29
      %s31 = sshll.u32 [#allocation5], 4
      %s32 = int_to_ptr.vmem [resolvable:$true] %s31
      %37 = dma.hbm_to_vmem [thread:$0]  %s1, 256, %s32, [#allocation6], 64, 64, 4
    $region9: #{tpu_custom_call.1} parent=1 // pred_fallthru
      _
    // Predicated region
    $region10: #{tpu_custom_call.1} parent=1 // pred_check
      _
    $region11: #{tpu_custom_call.1} parent=1 // pred_check_branch
      %39 = sbr.rel (0) target = $region13
    $region12: #{tpu_custom_call.1} parent=1 // pred_region
      _
    $region13: #{tpu_custom_call.1} parent=1 // pred_fallthru
      _
    // Predicated region
    $region14: #{tpu_custom_call.1} parent=1 // pred_check
      _
    $region15: #{tpu_custom_call.1} parent=1 // pred_check_branch
      %41 = sbr.rel (0) target = $region17
    $region16: #{tpu_custom_call.1} parent=1 // pred_region
      %s43 = ssub.s32 1024, 1024
      %44 = vsyncadd [#allocation6], %s43
      %s45 = sshll.u32 [#allocation7], 4
      %s46 = int_to_ptr.vmem [resolvable:$true] %s45
      %51 = dma.hbm_to_vmem [thread:$0]  %s3, 1024, %s46, [#allocation6], 64, 64, 4
    $region17: #{tpu_custom_call.1} parent=1 // pred_fallthru
      _
    // Predicated region
    $region18: #{tpu_custom_call.1} parent=1 // pred_check
      _
    $region19: #{tpu_custom_call.1} parent=1 // pred_check_branch
      %53 = sbr.rel (0) target = $region21
    $region20: #{tpu_custom_call.1} parent=1 // pred_region
      _
    $region21: #{tpu_custom_call.1} parent=1 // pred_fallthru
      _
    // Predicated region
    $region22: #{tpu_custom_call.1} parent=1 // pred_check
      _
    $region23: #{tpu_custom_call.1} parent=1 // pred_check_branch
      %55 = sbr.rel (0) target = $region25
    $region24: #{tpu_custom_call.1} parent=1 // pred_region
      %s57 = ssub.s32 2048, 2048
      %58 = vsyncadd [#allocation9], %s57
      %s59 = sshll.u32 [#allocation8], 4
      %s60 = int_to_ptr.vmem [resolvable:$true] %s59
      %65 = dma.hbm_to_vmem [thread:$0]  %s5, 2048, %s60, [#allocation9], 128, 128, 8
    $region25: #{tpu_custom_call.1} parent=1 // pred_fallthru
      _
    // Predicated region
    $region26: #{tpu_custom_call.1} parent=1 // pred_check
      _
    $region27: #{tpu_custom_call.1} parent=1 // pred_check_branch
      %67 = sbr.rel (0) target = $region29
    $region28: #{tpu_custom_call.1} parent=1 // pred_region
      _
    $region29: #{tpu_custom_call.1} parent=1 // pred_fallthru
      _
    // Predicated region
    $region30: #{tpu_custom_call.1} parent=1 // pred_check
      _
    $region31: #{tpu_custom_call.1} parent=1 // pred_check_branch
      %69 = sbr.rel (0) target = $region33
    $region32: #{tpu_custom_call.1} parent=1 // pred_region
      %70 = dma.done [#allocation3], 128
    $region33: #{tpu_custom_call.1} parent=1 // pred_fallthru
      _
    // Predicated region
    $region34: #{tpu_custom_call.1} parent=1 // pred_check
      _
    $region35: #{tpu_custom_call.1} parent=1 // pred_check_branch
      %72 = sbr.rel (0) target = $region37
    $region36: #{tpu_custom_call.1} parent=1 // pred_region
      %73 = dma.done [#allocation6], 256
    $region37: #{tpu_custom_call.1} parent=1 // pred_fallthru
      _
    // Predicated region
    $region38: #{tpu_custom_call.1} parent=1 // pred_check
      _
    $region39: #{tpu_custom_call.1} parent=1 // pred_check_branch
      %75 = sbr.rel (0) target = $region41
    $region40: #{tpu_custom_call.1} parent=1 // pred_region
      %76 = dma.done [#allocation6], 1024
    $region41: #{tpu_custom_call.1} parent=1 // pred_fallthru
      _
    // Predicated region
    $region42: #{tpu_custom_call.1} parent=1 // pred_check
      _
    $region43: #{tpu_custom_call.1} parent=1 // pred_check_branch
      %78 = sbr.rel (0) target = $region45
    $region44: #{tpu_custom_call.1} parent=1 // pred_region
      %79 = dma.done [#allocation9], 2048
    $region45: #{tpu_custom_call.1} parent=1 // pred_fallthru
      _
    %v81 = vld [vmem:[#allocation2] sm:$0xff]
    %v82 = vpack.c.bf16 %v81, %v81
    %v83 = vld [vmem:[#allocation5] sm:$0xf]
    %v84 = vld [vmem:[#allocation5 + $0x4] sm:$0xf]
    %v85 = vld [vmem:[#allocation5 + $0x8] sm:$0xf]
    %v86 = vld [vmem:[#allocation5 + $0xc] sm:$0xf]
    %v87 = vld [vmem:[%s2] sm:$0x1]
    %v89 = vlaneseq
    %v90 = vshrl.u32 %v89, 7
    %v91 = vsub.s32 0, %v90
    %v92 = vrot.slane %v87, %v91
    %v98 = vunpack.c.l.b16 %v83
    %v99 = vunpack.c.l.b16 %v84
    %v100 = vunpack.c.l.b16 %v85
    %v101 = vunpack.c.l.b16 %v86
    %v102 = vpack.c.b16 %v99, %v98
    %v103 = vpack.c.b16 %v101, %v100
    %vm106 = vcmask 261120
    %v108 = vsel %vm106, %v82, 0
    %110 = vmatprep.subr.bf16.mxu0 0
    %111 = vmatpush1.bf16.msra.mxu0 0
    %112 = vmatprep.subr.bf16.mxu0 0
    %113 = vmatpush1.bf16.msra.mxu0 0
    %114 = vmatprep.subr.bf16.mxu0 0
    %115 = vmatpush1.bf16.msra.mxu0 0
    %116 = vmatprep.subr.bf16.mxu0 0
    %117 = vmatpush1.bf16.msra.mxu0 0
    %118 = vmatprep.subr.bf16.mxu0 0
    %119 = vmatpush1.bf16.msra.mxu0 0
    %120 = vmatprep.subr.bf16.mxu0 0
    %121 = vmatpush1.bf16.msra.mxu0 0
    %122 = vmatprep.subr.bf16.mxu0 0
    %123 = vmatpush1.bf16.msra.mxu0 %v103
    %124 = vmatprep.subr.bf16.mxu0 0
    %125 = vmatpush1.bf16.msra.mxu0 %v102
    %126 = vmatprep.subr.bf16.mxu0 0
    %127 = vmatpush2.bf16.msra.mxu0 0
    %128 = vmatprep.subr.bf16.mxu0 0
    %129 = vmatpush2.bf16.msra.mxu0 0
    %130 = vmatprep.subr.bf16.mxu0 0
    %131 = vmatpush2.bf16.msra.mxu0 0
    %132 = vmatprep.subr.bf16.mxu0 0
    %133 = vmatpush2.bf16.msra.mxu0 0
    %134 = vmatprep.subr.bf16.mxu0 0
    %135 = vmatpush2.bf16.msra.mxu0 0
    %136 = vmatprep.subr.bf16.mxu0 0
    %137 = vmatpush2.bf16.msra.mxu0 0
    %138 = vmatprep.subr.bf16.mxu0 0
    %139 = vmatpush2.bf16.msra.mxu0 0
    %140 = vmatprep.subr.bf16.mxu0 0
    %141 = vmatpush2.bf16.msra.mxu0 0
    %142 = vmatprep.mubr.bf16.mxu0 0
    %143 = vmatmul.mubr.bf16.gmra.mxu0 %v108
    %v144 = vpop.f32.mrf.mxu0
    %v145 = vadd.f32 %v92, %v144
    %v146 = vpop.f32.mrf.mxu0
    %v147 = vpop.f32.mrf.mxu0
    %v148 = vpop.f32.mrf.mxu0
    %149 = vdwg.mxu0
    %v150 = vmax.f32 %v145, 0.0
    %v151 = vpack.c.bf16 %v150, %v150
    %v152 = vld [vmem:[#allocation7] sm:$0xf]
    %v153 = vld [vmem:[#allocation7 + $0x4] sm:$0xf]
    %v154 = vld [vmem:[#allocation7 + $0x8] sm:$0xf]
    %v155 = vld [vmem:[#allocation7 + $0xc] sm:$0xf]
    %v156 = vld [vmem:[#allocation7 + $0x10] sm:$0xf]
    %v157 = vld [vmem:[#allocation7 + $0x14] sm:$0xf]
    %v158 = vld [vmem:[#allocation7 + $0x18] sm:$0xf]
    %v159 = vld [vmem:[#allocation7 + $0x1c] sm:$0xf]
    %v160 = vld [vmem:[#allocation7 + $0x20] sm:$0xf]
    %v161 = vld [vmem:[#allocation7 + $0x24] sm:$0xf]
    %v162 = vld [vmem:[#allocation7 + $0x28] sm:$0xf]
    %v163 = vld [vmem:[#allocation7 + $0x2c] sm:$0xf]
    %v164 = vld [vmem:[#allocation7 + $0x30] sm:$0xf]
    %v165 = vld [vmem:[#allocation7 + $0x34] sm:$0xf]
    %v166 = vld [vmem:[#allocation7 + $0x38] sm:$0xf]
    %v167 = vld [vmem:[#allocation7 + $0x3c] sm:$0xf]
    %v168 = vld [vmem:[%s4] sm:$0x1]
    %v170 = vlaneseq
    %v171 = vshrl.u32 %v170, 7
    %v172 = vsub.s32 0, %v171
    %v173 = vrot.slane %v168, %v172
    %v191 = vunpack.c.l.b16 %v152
    %v192 = vunpack.c.l.b16 %v153
    %v193 = vunpack.c.l.b16 %v154
    %v194 = vunpack.c.l.b16 %v155
    %v195 = vunpack.c.l.b16 %v156
    %v196 = vunpack.c.l.b16 %v157
    %v197 = vunpack.c.l.b16 %v158
    %v198 = vunpack.c.l.b16 %v159
    %v199 = vunpack.c.l.b16 %v160
    %v200 = vunpack.c.l.b16 %v161
    %v201 = vunpack.c.l.b16 %v162
    %v202 = vunpack.c.l.b16 %v163
    %v203 = vunpack.c.l.b16 %v164
    %v204 = vunpack.c.l.b16 %v165
    %v205 = vunpack.c.l.b16 %v166
    %v206 = vunpack.c.l.b16 %v167
    %v207 = vpack.c.b16 %v192, %v191
    %v208 = vpack.c.b16 %v194, %v193
    %v209 = vpack.c.b16 %v196, %v195
    %v210 = vpack.c.b16 %v198, %v197
    %v211 = vpack.c.b16 %v200, %v199
    %v212 = vpack.c.b16 %v202, %v201
    %v213 = vpack.c.b16 %v204, %v203
    %v214 = vpack.c.b16 %v206, %v205
    %223 = vmatprep.subr.bf16.mxu0 0
    %224 = vmatpush1.bf16.msra.mxu0 %v214
    %225 = vmatprep.subr.bf16.mxu0 0
    %226 = vmatpush1.bf16.msra.mxu0 %v213
    %227 = vmatprep.subr.bf16.mxu0 0
    %228 = vmatpush1.bf16.msra.mxu0 %v212
    %229 = vmatprep.subr.bf16.mxu0 0
    %230 = vmatpush1.bf16.msra.mxu0 %v211
    %231 = vmatprep.subr.bf16.mxu0 0
    %232 = vmatpush1.bf16.msra.mxu0 %v210
    %233 = vmatprep.subr.bf16.mxu0 0
    %234 = vmatpush1.bf16.msra.mxu0 %v209
    %235 = vmatprep.subr.bf16.mxu0 0
    %236 = vmatpush1.bf16.msra.mxu0 %v208
    %237 = vmatprep.subr.bf16.mxu0 0
    %238 = vmatpush1.bf16.msra.mxu0 %v207
    %239 = vmatprep.subr.bf16.mxu0 0
    %240 = vmatpush2.bf16.msra.mxu0 0
    %241 = vmatprep.subr.bf16.mxu0 0
    %242 = vmatpush2.bf16.msra.mxu0 0
    %243 = vmatprep.subr.bf16.mxu0 0
    %244 = vmatpush2.bf16.msra.mxu0 0
    %245 = vmatprep.subr.bf16.mxu0 0
    %246 = vmatpush2.bf16.msra.mxu0 0
    %247 = vmatprep.subr.bf16.mxu0 0
    %248 = vmatpush2.bf16.msra.mxu0 0
    %249 = vmatprep.subr.bf16.mxu0 0
    %250 = vmatpush2.bf16.msra.mxu0 0
    %251 = vmatprep.subr.bf16.mxu0 0
    %252 = vmatpush2.bf16.msra.mxu0 0
    %253 = vmatprep.subr.bf16.mxu0 0
    %254 = vmatpush2.bf16.msra.mxu0 0
    %255 = vmatprep.mubr.bf16.mxu0 0
    %256 = vmatmul.mubr.bf16.gmra.mxu0 %v151
    %v257 = vpop.f32.mrf.mxu0
    %v258 = vadd.f32 %v173, %v257
    %v259 = vpop.f32.mrf.mxu0
    %v260 = vpop.f32.mrf.mxu0
    %v261 = vpop.f32.mrf.mxu0
    %262 = vdwg.mxu0
    %v263 = vmax.f32 %v258, 0.0
    %v264 = vpack.c.bf16 %v263, %v263
    %v265 = vld [vmem:[#allocation8] sm:$0xff]
    %v266 = vld [vmem:[#allocation8 + $0x8] sm:$0xff]
    %v267 = vld [vmem:[#allocation8 + $0x10] sm:$0xff]
    %v268 = vld [vmem:[#allocation8 + $0x18] sm:$0xff]
    %v269 = vld [vmem:[#allocation8 + $0x20] sm:$0xff]
    %v270 = vld [vmem:[#allocation8 + $0x28] sm:$0xff]
    %v271 = vld [vmem:[#allocation8 + $0x30] sm:$0xff]
    %v272 = vld [vmem:[#allocation8 + $0x38] sm:$0xff]
    %v273 = vld [vmem:[#allocation8 + $0x40] sm:$0xff]
    %v274 = vld [vmem:[#allocation8 + $0x48] sm:$0xff]
    %v275 = vld [vmem:[#allocation8 + $0x50] sm:$0xff]
    %v276 = vld [vmem:[#allocation8 + $0x58] sm:$0xff]
    %v277 = vld [vmem:[#allocation8 + $0x60] sm:$0xff]
    %v278 = vld [vmem:[#allocation8 + $0x68] sm:$0xff]
    %v279 = vld [vmem:[#allocation8 + $0x70] sm:$0xff]
    %v280 = vld [vmem:[#allocation8 + $0x78] sm:$0xff]
    %v281 = vld [vmem:[%s6] sm:$0x3]
    %v283 = vlaneseq
    %v284 = vshrl.u32 %v283, 7
    %v285 = vsub.s32 0, %v284
    %v286 = vrot.slane %v281, %v285
    %v287 = vlaneseq
    %v288 = vshrl.u32 %v287, 7
    %v289 = vsub.s32 1, %v288
    %v290 = vrot.slane %v281, %v289
    %v309 = vunpack.c.l.b16 %v265
    %v310 = vunpack.c.h.b16 %v265
    %v311 = vunpack.c.l.b16 %v266
    %v312 = vunpack.c.h.b16 %v266
    %v313 = vunpack.c.l.b16 %v267
    %v314 = vunpack.c.h.b16 %v267
    %v315 = vunpack.c.l.b16 %v268
    %v316 = vunpack.c.h.b16 %v268
    %v317 = vunpack.c.l.b16 %v269
    %v318 = vunpack.c.h.b16 %v269
    %v319 = vunpack.c.l.b16 %v270
    %v320 = vunpack.c.h.b16 %v270
    %v321 = vunpack.c.l.b16 %v271
    %v322 = vunpack.c.h.b16 %v271
    %v323 = vunpack.c.l.b16 %v272
    %v324 = vunpack.c.h.b16 %v272
    %v325 = vunpack.c.l.b16 %v273
    %v326 = vunpack.c.h.b16 %v273
    %v327 = vunpack.c.l.b16 %v274
    %v328 = vunpack.c.h.b16 %v274
    %v329 = vunpack.c.l.b16 %v275
    %v330 = vunpack.c.h.b16 %v275
    %v331 = vunpack.c.l.b16 %v276
    %v332 = vunpack.c.h.b16 %v276
    %v333 = vunpack.c.l.b16 %v277
    %v334 = vunpack.c.h.b16 %v277
    %v335 = vunpack.c.l.b16 %v278
    %v336 = vunpack.c.h.b16 %v278
    %v337 = vunpack.c.l.b16 %v279
    %v338 = vunpack.c.h.b16 %v279
    %v339 = vunpack.c.l.b16 %v280
    %v340 = vunpack.c.h.b16 %v280
    %v341 = vpack.c.b16 %v311, %v309
    %v342 = vpack.c.b16 %v312, %v310
    %v343 = vpack.c.b16 %v315, %v313
    %v344 = vpack.c.b16 %v316, %v314
    %v345 = vpack.c.b16 %v319, %v317
    %v346 = vpack.c.b16 %v320, %v318
    %v347 = vpack.c.b16 %v323, %v321
    %v348 = vpack.c.b16 %v324, %v322
    %v349 = vpack.c.b16 %v327, %v325
    %v350 = vpack.c.b16 %v328, %v326
    %v351 = vpack.c.b16 %v331, %v329
    %v352 = vpack.c.b16 %v332, %v330
    %v353 = vpack.c.b16 %v335, %v333
    %v354 = vpack.c.b16 %v336, %v334
    %v355 = vpack.c.b16 %v339, %v337
    %v356 = vpack.c.b16 %v340, %v338
    %373 = vmatprep.subr.bf16.mxu0 %v356
    %374 = vmatpush1.bf16.msra.mxu0 %v355
    %375 = vmatprep.subr.bf16.mxu0 %v354
    %376 = vmatpush1.bf16.msra.mxu0 %v353
    %377 = vmatprep.subr.bf16.mxu0 %v352
    %378 = vmatpush1.bf16.msra.mxu0 %v351
    %379 = vmatprep.subr.bf16.mxu0 %v350
    %380 = vmatpush1.bf16.msra.mxu0 %v349
    %381 = vmatprep.subr.bf16.mxu0 %v348
    %382 = vmatpush1.bf16.msra.mxu0 %v347
    %383 = vmatprep.subr.bf16.mxu0 %v346
    %384 = vmatpush1.bf16.msra.mxu0 %v345
    %385 = vmatprep.subr.bf16.mxu0 %v344
    %386 = vmatpush1.bf16.msra.mxu0 %v343
    %387 = vmatprep.subr.bf16.mxu0 %v342
    %388 = vmatpush1.bf16.msra.mxu0 %v341
    %389 = vmatprep.subr.bf16.mxu0 0
    %390 = vmatpush2.bf16.msra.mxu0 0
    %391 = vmatprep.subr.bf16.mxu0 0
    %392 = vmatpush2.bf16.msra.mxu0 0
    %393 = vmatprep.subr.bf16.mxu0 0
    %394 = vmatpush2.bf16.msra.mxu0 0
    %395 = vmatprep.subr.bf16.mxu0 0
    %396 = vmatpush2.bf16.msra.mxu0 0
    %397 = vmatprep.subr.bf16.mxu0 0
    %398 = vmatpush2.bf16.msra.mxu0 0
    %399 = vmatprep.subr.bf16.mxu0 0
    %400 = vmatpush2.bf16.msra.mxu0 0
    %401 = vmatprep.subr.bf16.mxu0 0
    %402 = vmatpush2.bf16.msra.mxu0 0
    %403 = vmatprep.subr.bf16.mxu0 0
    %404 = vmatpush2.bf16.msra.mxu0 0
    %405 = vmatprep.mubr.bf16.mxu0 0
    %406 = vmatmul.mubr.bf16.gmra.mxu0 %v264
    %v407 = vpop.f32.mrf.mxu0
    %v408 = vadd.f32 %v286, %v407
    %v409 = vpop.f32.mrf.mxu0
    %v410 = vadd.f32 %v290, %v409
    %v411 = vpop.f32.mrf.mxu0
    %v412 = vpop.f32.mrf.mxu0
    %413 = vdwg.mxu0
    %v414 = vpack.c.bf16 %v408, %v408
    %v415 = vpack.c.bf16 %v410, %v410
    %v418 = vunpack.c.l.b16 %v414
    %v419 = vunpack.c.l.b16 %v415
    %v420 = vpack.c.b16 %v419, %v418
    %422 = vst [vmem:[#allocation10] sm:$0xff] %v420
    // Predicated region
    $region46: #{tpu_custom_call.1} parent=1 // pred_check
      _
    $region47: #{tpu_custom_call.1} parent=1 // pred_check_branch
      %424 = sbr.rel (0) target = $region49
    $region48: #{tpu_custom_call.1} parent=1 // pred_region
      %s426 = ssub.s32 128, 128
      %427 = vsyncadd [#allocation4], %s426
      %s429 = sshll.u32 [#allocation10], 4
      %s430 = int_to_ptr.vmem [resolvable:$true] %s429
      %432 = dma.vmem_to_hbm [thread:$0]  %s430, 128, %s7, [#allocation4]
    $region49: #{tpu_custom_call.1} parent=1 // pred_fallthru
      _
    // Predicated region
    $region50: #{tpu_custom_call.1} parent=1 // pred_check
      _
    $region51: #{tpu_custom_call.1} parent=1 // pred_check_branch
      %434 = sbr.rel (0) target = $region53
    $region52: #{tpu_custom_call.1} parent=1 // pred_region
      %435 = dma.done [#allocation4], 128
    $region53: #{tpu_custom_call.1} parent=1 // pred_fallthru
      _
    %436 = vsyncpa [#allocation3], 1
    %437 = vsyncpa [#allocation6], 1
    %438 = vsyncpa [#allocation9], 1
    %439 = vsyncpa [#allocation4], 1

</llo_original>
